<compile_context>
chip_gen: v7x
topology: tpu7x:2x2x1
jax: 0.10.0
libtpu: 0.0.40
codegen_flags: <defaults>
</compile_context>

<pallas_src>
import jax
import jax.numpy as jnp
from jax.experimental import pallas as pl
from jax.experimental.pallas import tpu as pltpu

NEG_SLOPE = 0.01  # F.leaky_relu default negative_slope
HID = 32          # fc1/fc2 hidden width


def _leaky_relu(x):
    return jnp.where(x > 0, x, NEG_SLOPE * x)


def pnet_kernel(x_ref, a_ref, w1_ref, b1_ref, w2_ref, b2_ref,
                woh_ref, woa_ref, bo_ref, o_ref):
    # x_ref:  (TILE_N, F) f32 (HWC-ordered features)   a_ref: (TILE_N, 1) i32
    # w1_ref: (F, 32)   b1_ref: (1, 32)
    # w2_ref: (32, 32)  b2_ref: (1, 32)
    # woh_ref:(32, out) woa_ref:(A, out)  bo_ref:(1, out)
    x = x_ref[...]
    h1 = _leaky_relu(
        jnp.dot(x, w1_ref[...], preferred_element_type=jnp.float32) + b1_ref[...])
    h2 = _leaky_relu(
        jnp.dot(h1, w2_ref[...], preferred_element_type=jnp.float32) + b2_ref[...])

    out = jnp.dot(h2, woh_ref[...], preferred_element_type=jnp.float32) + bo_ref[...]

    # one_hot(a) @ Wout[:, 32:].T as a tiny unrolled VPU select-sum (A is small).
    a_col = a_ref[...]                               # (TILE_N, 1) int32
    woa = woa_ref[...]                               # (A, out_dim)
    for i in range(woa.shape[0]):
        sel = (a_col == i).astype(jnp.float32)       # (TILE_N, 1)
        out = out + sel * woa[i:i + 1, :]            # -> (TILE_N, out_dim)

    o_ref[...] = out


def init_params(key, action_num, num_agents, H=13, W=13, C=6):
    """PyTorch-layout params (w1 rows indexed in CHW feature order, like nn.Linear)."""
    in_dim = H * W * C
    out_in = HID + action_num
    out_dim = (num_agents - 1) * action_num
    ks = jax.random.split(key, 6)
    # weights ~ N(0, 0.1) exactly like .data.normal_(0, 0.1)
    w1 = 0.1 * jax.random.normal(ks[0], (HID, in_dim), jnp.float32)
    w2 = 0.1 * jax.random.normal(ks[1], (HID, HID), jnp.float32)
    wo = 0.1 * jax.random.normal(ks[2], (out_dim, out_in), jnp.float32)
    # biases: small uniform (PyTorch default Linear bias init style)
    b1 = jax.random.uniform(ks[3], (1, HID), jnp.float32, -0.03, 0.03)
    b2 = jax.random.uniform(ks[4], (1, HID), jnp.float32, -0.17, 0.17)
    bo = jax.random.uniform(ks[5], (1, out_dim), jnp.float32, -0.16, 0.16)
    return {"w1": w1, "b1": b1, "w2": w2, "b2": b2, "wo": wo, "bo": bo}


def pack_params(params, H=13, W=13, C=6):
    """Kernel-side params: fold obs.permute(0,1,4,2,3) into fc1 (CHW -> HWC row perm),
    transpose weights to (in, out), and split Wout into hidden / one-hot halves."""
    chw_index = jnp.arange(C * H * W).reshape(C, H, W)
    perm = jnp.transpose(chw_index, (1, 2, 0)).reshape(-1)  # HWC pos -> CHW index
    w1_t_hwc = params["w1"].T[perm]                         # (H*W*C, 32), HWC row order
    wo = params["wo"]
    return {
        "w1_t": w1_t_hwc, "b1": params["b1"],
        "w2_t": params["w2"].T, "b2": params["b2"],
        "wo_h_t": wo[:, :HID].T,          # (32, out_dim)
        "wo_a_t": wo[:, HID:].T,          # (A, out_dim)
        "bo": params["bo"],
    }


def pnet_forward(obs, a, kparams, action_num, num_agents, tile_n=1024):
    """obs: (B, S, H, W, C), a: (B, S, 1) int -> (B, S, (num_agents-1)*action_num)."""
    # TODO(synk): the external `obs_feature` module passed to PyTorch forward() is
    # assumed identity; a non-identity extractor would have to run before the
    # HWC weight fold (and would re-introduce the permute).
    B, S = obs.shape[0], obs.shape[1]
    N = B * S
    F = obs.shape[2] * obs.shape[3] * obs.shape[4]
    # Permutation is folded into w1, so this reshape is a free (no-copy) flatten.
    x = obs.reshape(N, F).astype(jnp.float32)
    a_flat = a.reshape(N, 1).astype(jnp.int32)

    out_dim = (num_agents - 1) * action_num
    A = action_num

    TILE_N = tile_n if N >= tile_n else N     # TILE_N==N is a legal full-dim block
    grid = (pl.cdiv(N, TILE_N),)

    row_spec = lambda cols: pl.BlockSpec((TILE_N, cols), lambda i: (i, 0))
    res_spec = lambda shape: pl.BlockSpec(shape, lambda i: (0, 0))  # VMEM-resident

    flops = 2 * N * (F * HID + HID * HID + HID * out_dim)
    bytes_accessed = (N * F * 4 + N * 4 + N * out_dim * 4
                      + 4 * (F * HID + HID * HID + HID * out_dim
                             + A * out_dim + 2 * HID + out_dim))

    out = pl.pallas_call(
        pnet_kernel,
        out_shape=jax.ShapeDtypeStruct((N, out_dim), jnp.float32),
        grid=grid,
        in_specs=[
            row_spec(F),                      # x       (tiled over rows)
            row_spec(1),                      # a       (tiled over rows)
            res_spec((F, HID)),               # w1_t    (resident)
            res_spec((1, HID)),               # b1
            res_spec((HID, HID)),             # w2_t
            res_spec((1, HID)),               # b2
            res_spec((HID, out_dim)),         # wo_h_t
            res_spec((A, out_dim)),           # wo_a_t
            res_spec((1, out_dim)),           # bo
        ],
        out_specs=row_spec(out_dim),
        compiler_params=pltpu.CompilerParams(
            dimension_semantics=("parallel",)),
        cost_estimate=pl.CostEstimate(
            flops=flops, transcendentals=0, bytes_accessed=bytes_accessed),
    )(x, a_flat,
      kparams["w1_t"], kparams["b1"],
      kparams["w2_t"], kparams["b2"],
      kparams["wo_h_t"], kparams["wo_a_t"], kparams["bo"])

    return out.reshape(B, S, out_dim)


def pnet_reference(obs, a, params, action_num, num_agents):
    """Pure-JAX reference mirroring the PyTorch forward (CHW flatten + concat)."""
    B, S = obs.shape[0], obs.shape[1]
    x = jnp.transpose(obs, (0, 1, 4, 2, 3)).reshape(B * S, -1).astype(jnp.float32)
    h1 = _leaky_relu(x @ params["w1"].T + params["b1"])
    h2 = _leaky_relu(h1 @ params["w2"].T + params["b2"])
    onehot = jax.nn.one_hot(a.reshape(B * S), action_num, dtype=jnp.float32)
    feat = jnp.concatenate([h2, onehot], axis=-1)
    out = feat @ params["wo"].T + params["bo"]
    return out.reshape(B, S, (num_agents - 1) * action_num)


if __name__ == "__main__":
    key = jax.random.PRNGKey(0)
    k_obs, k_a, k_par = jax.random.split(key, 3)

    action_num = 4
    num_agents = 3
    B, S, H, W, C = 2, 8, 13, 13, 6          # 13*13*6 = 169*6 = fc1 in-features

    obs = jax.random.normal(k_obs, (B, S, H, W, C), jnp.float32)
    a = jax.random.randint(k_a, (B, S, 1), 0, action_num, jnp.int32)

    params = init_params(k_par, action_num, num_agents, H, W, C)
    kparams = pack_params(params, H, W, C)

    out = pnet_forward(obs, a, kparams, action_num, num_agents)
    out = jax.block_until_ready(out)

    ref = pnet_reference(obs, a, params, action_num, num_agents)
    assert out.shape == (B, S, (num_agents - 1) * action_num)
    assert jnp.max(jnp.abs(out - ref)) < 1e-4, "mismatch vs pure-JAX reference"

    print("KERNEL_OK")
</pallas_src>

<mosaic_0001>
module attributes {stable_mosaic.version = 11 : i64} {
  func.func @pnet_kernel(%arg0: i32, %arg1: memref<16x1014xf32, #tpu.memory_space<vmem>>, %arg2: memref<16x1xi32, #tpu.memory_space<vmem>>, %arg3: memref<1014x32xf32, #tpu.memory_space<vmem>>, %arg4: memref<1x32xf32, #tpu.memory_space<vmem>>, %arg5: memref<32x32xf32, #tpu.memory_space<vmem>>, %arg6: memref<1x32xf32, #tpu.memory_space<vmem>>, %arg7: memref<32x8xf32, #tpu.memory_space<vmem>>, %arg8: memref<4x8xf32, #tpu.memory_space<vmem>>, %arg9: memref<1x8xf32, #tpu.memory_space<vmem>>, %arg10: memref<16x8xf32, #tpu.memory_space<vmem>>) attributes {dimension_semantics = [#tpu.dimension_semantics<parallel>], iteration_bounds = array<i64: 1>, scalar_prefetch = 0 : i64, scratch_operands = 0 : i64, tpu.core_type = #tpu.core_type<tc>, window_params = [{transform_indices = @transform_0, window_bounds = array<i64: 16, 1014>}, {transform_indices = @transform_1, window_bounds = array<i64: 16, 1>}, {pipeline_mode = #tpu.pipeline_mode<synchronous>, transform_indices = @transform_2, window_bounds = array<i64: 1014, 32>}, {pipeline_mode = #tpu.pipeline_mode<synchronous>, transform_indices = @transform_3, window_bounds = array<i64: 1, 32>}, {pipeline_mode = #tpu.pipeline_mode<synchronous>, transform_indices = @transform_4, window_bounds = array<i64: 32, 32>}, {pipeline_mode = #tpu.pipeline_mode<synchronous>, transform_indices = @transform_5, window_bounds = array<i64: 1, 32>}, {pipeline_mode = #tpu.pipeline_mode<synchronous>, transform_indices = @transform_6, window_bounds = array<i64: 32, 8>}, {pipeline_mode = #tpu.pipeline_mode<synchronous>, transform_indices = @transform_7, window_bounds = array<i64: 4, 8>}, {pipeline_mode = #tpu.pipeline_mode<synchronous>, transform_indices = @transform_8, window_bounds = array<i64: 1, 8>}, {transform_indices = @transform_9, window_bounds = array<i64: 16, 8>}]} {
    %c0 = arith.constant 0 : index
    %c0_0 = arith.constant 0 : index
    %0 = vector.load %arg1[%c0, %c0_0] : memref<16x1014xf32, #tpu.memory_space<vmem>>, vector<16x1014xf32>
    %c0_1 = arith.constant 0 : index
    %c0_2 = arith.constant 0 : index
    %1 = vector.load %arg3[%c0_1, %c0_2] : memref<1014x32xf32, #tpu.memory_space<vmem>>, vector<1014x32xf32>
    %cst = arith.constant dense<0.000000e+00> : vector<16x32xf32>
    %2 = tpu.matmul %0, %1, %cst {dimension_numbers = #tpu.dot_dimension_numbers<[1], [0], [0], [1], [0, 0, 1, 1], [], []>} : vector<16x1014xf32>, vector<1014x32xf32>, vector<16x32xf32> -> vector<16x32xf32>
    %c0_3 = arith.constant 0 : index
    %c0_4 = arith.constant 0 : index
    %3 = vector.load %arg4[%c0_3, %c0_4] : memref<1x32xf32, #tpu.memory_space<vmem>>, vector<1x32xf32>
    %4 = vector.broadcast %3 : vector<1x32xf32> to vector<16x32xf32>
    %5 = arith.addf %2, %4 : vector<16x32xf32>
    %cst_5 = arith.constant 0.000000e+00 : f32
    %6 = vector.broadcast %cst_5 : f32 to vector<16x32xf32>
    %7 = arith.cmpf ogt, %5, %6 : vector<16x32xf32>
    %cst_6 = arith.constant 0.00999999977 : f32
    %8 = vector.broadcast %cst_6 : f32 to vector<16x32xf32>
    %9 = arith.mulf %8, %5 : vector<16x32xf32>
    %10 = arith.select %7, %5, %9 : vector<16x32xi1>, vector<16x32xf32>
    %c0_7 = arith.constant 0 : index
    %c0_8 = arith.constant 0 : index
    %11 = vector.load %arg5[%c0_7, %c0_8] : memref<32x32xf32, #tpu.memory_space<vmem>>, vector<32x32xf32>
    %cst_9 = arith.constant dense<0.000000e+00> : vector<16x32xf32>
    %12 = tpu.matmul %10, %11, %cst_9 {dimension_numbers = #tpu.dot_dimension_numbers<[1], [0], [0], [1], [0, 0, 1, 1], [], []>} : vector<16x32xf32>, vector<32x32xf32>, vector<16x32xf32> -> vector<16x32xf32>
    %c0_10 = arith.constant 0 : index
    %c0_11 = arith.constant 0 : index
    %13 = vector.load %arg6[%c0_10, %c0_11] : memref<1x32xf32, #tpu.memory_space<vmem>>, vector<1x32xf32>
    %14 = vector.broadcast %13 : vector<1x32xf32> to vector<16x32xf32>
    %15 = arith.addf %12, %14 : vector<16x32xf32>
    %cst_12 = arith.constant 0.000000e+00 : f32
    %16 = vector.broadcast %cst_12 : f32 to vector<16x32xf32>
    %17 = arith.cmpf ogt, %15, %16 : vector<16x32xf32>
    %cst_13 = arith.constant 0.00999999977 : f32
    %18 = vector.broadcast %cst_13 : f32 to vector<16x32xf32>
    %19 = arith.mulf %18, %15 : vector<16x32xf32>
    %20 = arith.select %17, %15, %19 : vector<16x32xi1>, vector<16x32xf32>
    %c0_14 = arith.constant 0 : index
    %c0_15 = arith.constant 0 : index
    %21 = vector.load %arg7[%c0_14, %c0_15] : memref<32x8xf32, #tpu.memory_space<vmem>>, vector<32x8xf32>
    %cst_16 = arith.constant dense<0.000000e+00> : vector<16x8xf32>
    %22 = tpu.matmul %20, %21, %cst_16 {dimension_numbers = #tpu.dot_dimension_numbers<[1], [0], [0], [1], [0, 0, 1, 1], [], []>} : vector<16x32xf32>, vector<32x8xf32>, vector<16x8xf32> -> vector<16x8xf32>
    %c0_17 = arith.constant 0 : index
    %c0_18 = arith.constant 0 : index
    %23 = vector.load %arg9[%c0_17, %c0_18] : memref<1x8xf32, #tpu.memory_space<vmem>>, vector<1x8xf32>
    %24 = vector.broadcast %23 : vector<1x8xf32> to vector<16x8xf32>
    %25 = arith.addf %22, %24 : vector<16x8xf32>
    %c0_19 = arith.constant 0 : index
    %c0_20 = arith.constant 0 : index
    %26 = vector.load %arg2[%c0_19, %c0_20] : memref<16x1xi32, #tpu.memory_space<vmem>>, vector<16x1xi32>
    %c0_21 = arith.constant 0 : index
    %c0_22 = arith.constant 0 : index
    %27 = vector.load %arg8[%c0_21, %c0_22] : memref<4x8xf32, #tpu.memory_space<vmem>>, vector<4x8xf32>
    %c0_i32 = arith.constant 0 : i32
    %28 = vector.broadcast %c0_i32 : i32 to vector<16x1xi32>
    %29 = arith.cmpi eq, %26, %28 : vector<16x1xi32>
    %30 = arith.extui %29 : vector<16x1xi1> to vector<16x1xi32>
    %31 = arith.sitofp %30 : vector<16x1xi32> to vector<16x1xf32>
    %32 = vector.extract_strided_slice %27 {offsets = [0, 0], sizes = [1, 8], strides = [1, 1]} : vector<4x8xf32> to vector<1x8xf32>
    %33 = vector.broadcast %31 : vector<16x1xf32> to vector<16x8xf32>
    %34 = vector.broadcast %32 : vector<1x8xf32> to vector<16x8xf32>
    %35 = arith.mulf %33, %34 : vector<16x8xf32>
    %36 = arith.addf %25, %35 : vector<16x8xf32>
    %c1_i32 = arith.constant 1 : i32
    %37 = vector.broadcast %c1_i32 : i32 to vector<16x1xi32>
    %38 = arith.cmpi eq, %26, %37 : vector<16x1xi32>
    %39 = arith.extui %38 : vector<16x1xi1> to vector<16x1xi32>
    %40 = arith.sitofp %39 : vector<16x1xi32> to vector<16x1xf32>
    %41 = vector.extract_strided_slice %27 {offsets = [1, 0], sizes = [1, 8], strides = [1, 1]} : vector<4x8xf32> to vector<1x8xf32>
    %42 = vector.broadcast %40 : vector<16x1xf32> to vector<16x8xf32>
    %43 = vector.broadcast %41 : vector<1x8xf32> to vector<16x8xf32>
    %44 = arith.mulf %42, %43 : vector<16x8xf32>
    %45 = arith.addf %36, %44 : vector<16x8xf32>
    %c2_i32 = arith.constant 2 : i32
    %46 = vector.broadcast %c2_i32 : i32 to vector<16x1xi32>
    %47 = arith.cmpi eq, %26, %46 : vector<16x1xi32>
    %48 = arith.extui %47 : vector<16x1xi1> to vector<16x1xi32>
    %49 = arith.sitofp %48 : vector<16x1xi32> to vector<16x1xf32>
    %50 = vector.extract_strided_slice %27 {offsets = [2, 0], sizes = [1, 8], strides = [1, 1]} : vector<4x8xf32> to vector<1x8xf32>
    %51 = vector.broadcast %49 : vector<16x1xf32> to vector<16x8xf32>
    %52 = vector.broadcast %50 : vector<1x8xf32> to vector<16x8xf32>
    %53 = arith.mulf %51, %52 : vector<16x8xf32>
    %54 = arith.addf %45, %53 : vector<16x8xf32>
    %c3_i32 = arith.constant 3 : i32
    %55 = vector.broadcast %c3_i32 : i32 to vector<16x1xi32>
    %56 = arith.cmpi eq, %26, %55 : vector<16x1xi32>
    %57 = arith.extui %56 : vector<16x1xi1> to vector<16x1xi32>
    %58 = arith.sitofp %57 : vector<16x1xi32> to vector<16x1xf32>
    %59 = vector.extract_strided_slice %27 {offsets = [3, 0], sizes = [1, 8], strides = [1, 1]} : vector<4x8xf32> to vector<1x8xf32>
    %60 = vector.broadcast %58 : vector<16x1xf32> to vector<16x8xf32>
    %61 = vector.broadcast %59 : vector<1x8xf32> to vector<16x8xf32>
    %62 = arith.mulf %60, %61 : vector<16x8xf32>
    %63 = arith.addf %54, %62 : vector<16x8xf32>
    %c0_23 = arith.constant 0 : index
    %c0_24 = arith.constant 0 : index
    %64 = vector.load %arg10[%c0_23, %c0_24] : memref<16x8xf32, #tpu.memory_space<vmem>>, vector<16x8xf32>
    tpu.vector_store %arg10[%c0_23, %c0_24], %63 {strides = array<i32>} : memref<16x8xf32, #tpu.memory_space<vmem>>, vector<16x8xf32>,
    return
  }
  func.func @transform_0(%arg0: i32) -> (i32, i32) {
    %c0_i32 = arith.constant 0 : i32
    %c0_i32_0 = arith.constant 0 : i32
    return %arg0, %c0_i32 : i32, i32
  }
  func.func @transform_1(%arg0: i32) -> (i32, i32) {
    %c0_i32 = arith.constant 0 : i32
    %c0_i32_0 = arith.constant 0 : i32
    return %arg0, %c0_i32 : i32, i32
  }
  func.func @transform_2(%arg0: i32) -> (i32, i32) {
    %c0_i32 = arith.constant 0 : i32
    %c0_i32_0 = arith.constant 0 : i32
    %c0_i32_1 = arith.constant 0 : i32
    return %c0_i32, %c0_i32_0 : i32, i32
  }
  func.func @transform_3(%arg0: i32) -> (i32, i32) {
    %c0_i32 = arith.constant 0 : i32
    %c0_i32_0 = arith.constant 0 : i32
    %c0_i32_1 = arith.constant 0 : i32
    return %c0_i32, %c0_i32_0 : i32, i32
  }
  func.func @transform_4(%arg0: i32) -> (i32, i32) {
    %c0_i32 = arith.constant 0 : i32
    %c0_i32_0 = arith.constant 0 : i32
    %c0_i32_1 = arith.constant 0 : i32
    return %c0_i32, %c0_i32_0 : i32, i32
  }
  func.func @transform_5(%arg0: i32) -> (i32, i32) {
    %c0_i32 = arith.constant 0 : i32
    %c0_i32_0 = arith.constant 0 : i32
    %c0_i32_1 = arith.constant 0 : i32
    return %c0_i32, %c0_i32_0 : i32, i32
  }
  func.func @transform_6(%arg0: i32) -> (i32, i32) {
    %c0_i32 = arith.constant 0 : i32
    %c0_i32_0 = arith.constant 0 : i32
    %c0_i32_1 = arith.constant 0 : i32
    return %c0_i32, %c0_i32_0 : i32, i32
  }
  func.func @transform_7(%arg0: i32) -> (i32, i32) {
    %c0_i32 = arith.constant 0 : i32
    %c0_i32_0 = arith.constant 0 : i32
    %c0_i32_1 = arith.constant 0 : i32
    return %c0_i32, %c0_i32_0 : i32, i32
  }
  func.func @transform_8(%arg0: i32) -> (i32, i32) {
    %c0_i32 = arith.constant 0 : i32
    %c0_i32_0 = arith.constant 0 : i32
    %c0_i32_1 = arith.constant 0 : i32
    return %c0_i32, %c0_i32_0 : i32, i32
  }
  func.func @transform_9(%arg0: i32) -> (i32, i32) {
    %c0_i32 = arith.constant 0 : i32
    %c0_i32_0 = arith.constant 0 : i32
    return %arg0, %c0_i32 : i32, i32
  }
}

</mosaic_0001>

<llo_original>
// kernel: tpu_custom_call.1
$region0: #{tpu_custom_call.1}
  #allocation0 [shape = 'u32[]', space=smem, size = 0x4, offset = 0x4, fixed_abs, tag = 'smem constant byte address 0x4 - core index']
  #allocation1 [shape = 'u32[144,128]{1,0:T(1,128)}', space=vmem, size = 0x12000, scoped, tag = 'internal scratch']
  %s0 = inlined_call_operand.vmem [shape: f32[16,1014], index: 0, kind: input, shape index: {}]
  %s1 = inlined_call_operand.vmem [shape: s32[16,1], index: 1, kind: input, shape index: {}]
  %s2 = inlined_call_operand.vmem [shape: f32[1014,32], index: 2, kind: input, shape index: {}]
  %s3 = inlined_call_operand.vmem [shape: f32[1,32], index: 3, kind: input, shape index: {}]
  %s4 = inlined_call_operand.vmem [shape: f32[32,32], index: 4, kind: input, shape index: {}]
  %s5 = inlined_call_operand.vmem [shape: f32[1,32], index: 5, kind: input, shape index: {}]
  %s6 = inlined_call_operand.vmem [shape: f32[32,8], index: 6, kind: input, shape index: {}]
  %s7 = inlined_call_operand.vmem [shape: f32[4,8], index: 7, kind: input, shape index: {}]
  %s8 = inlined_call_operand.vmem [shape: f32[1,8], index: 8, kind: input, shape index: {}]
  %s9 = inlined_call_operand.vmem [shape: f32[16,8], index: 9, kind: output, shape index: {}]
  %s10 = sld [smem:[#allocation0]]
  $region46: #{tpu_custom_call.1} parent=0
    _
  %s12 = ssub.s32 1, %s10
  %s13 = scalar_select 0, %s12, %s10
  // Predicated region
  $region2: #{tpu_custom_call.1} parent=0 // pred_check
    _
  $region3: #{tpu_custom_call.1} parent=0 // pred_check_branch
    %15 = sbr.rel (0) target = $region5
  $region4: #{tpu_custom_call.1} parent=0 // pred_region
    _
  $region5: #{tpu_custom_call.1} parent=0 // pred_fallthru
    _
  // Predicated region
  $region6: #{tpu_custom_call.1} parent=0 // pred_check
    _
  $region7: #{tpu_custom_call.1} parent=0 // pred_check_branch
    %17 = sbr.rel (0) target = $region9
  $region8: #{tpu_custom_call.1} parent=0 // pred_region
    _
  $region9: #{tpu_custom_call.1} parent=0 // pred_fallthru
    _
  // Predicated region
  $region10: #{tpu_custom_call.1} parent=0 // pred_check
    _
  $region11: #{tpu_custom_call.1} parent=0 // pred_check_branch
    %19 = sbr.rel (0) target = $region13
  $region12: #{tpu_custom_call.1} parent=0 // pred_region
    _
  $region13: #{tpu_custom_call.1} parent=0 // pred_fallthru
    _
  // Predicated region
  $region14: #{tpu_custom_call.1} parent=0 // pred_check
    _
  $region15: #{tpu_custom_call.1} parent=0 // pred_check_branch
    %21 = sbr.rel (0) target = $region17
  $region16: #{tpu_custom_call.1} parent=0 // pred_region
    _
  $region17: #{tpu_custom_call.1} parent=0 // pred_fallthru
    _
  // Predicated region
  $region18: #{tpu_custom_call.1} parent=0 // pred_check
    _
  $region19: #{tpu_custom_call.1} parent=0 // pred_check_branch
    %23 = sbr.rel (0) target = $region21
  $region20: #{tpu_custom_call.1} parent=0 // pred_region
    _
  $region21: #{tpu_custom_call.1} parent=0 // pred_fallthru
    _
  // Predicated region
  $region22: #{tpu_custom_call.1} parent=0 // pred_check
    _
  $region23: #{tpu_custom_call.1} parent=0 // pred_check_branch
    %25 = sbr.rel (0) target = $region25
  $region24: #{tpu_custom_call.1} parent=0 // pred_region
    _
  $region25: #{tpu_custom_call.1} parent=0 // pred_fallthru
    _
  // Predicated region
  $region26: #{tpu_custom_call.1} parent=0 // pred_check
    _
  $region27: #{tpu_custom_call.1} parent=0 // pred_check_branch
    %27 = sbr.rel (0) target = $region29
  $region28: #{tpu_custom_call.1} parent=0 // pred_region
    _
  $region29: #{tpu_custom_call.1} parent=0 // pred_fallthru
    _
  // Predicated region
  $region30: #{tpu_custom_call.1} parent=0 // pred_check
    _
  $region31: #{tpu_custom_call.1} parent=0 // pred_check_branch
    %29 = sbr.rel (0) target = $region33
  $region32: #{tpu_custom_call.1} parent=0 // pred_region
    _
  $region33: #{tpu_custom_call.1} parent=0 // pred_fallthru
    _
  // Predicated region
  $region34: #{tpu_custom_call.1} parent=0 // pred_check
    _
  $region35: #{tpu_custom_call.1} parent=0 // pred_check_branch
    %31 = sbr.rel (0) target = $region37
  $region36: #{tpu_custom_call.1} parent=0 // pred_region
    _
  $region37: #{tpu_custom_call.1} parent=0 // pred_fallthru
    _
  %v32 = vld [vmem:[%s0] sm:$0xff]
  %v33 = vld [vmem:[%s0 + $0x8] sm:$0xff]
  %v34 = vld [vmem:[%s0 + $0x10] sm:$0xff]
  %v35 = vld [vmem:[%s0 + $0x18] sm:$0xff]
  %v36 = vld [vmem:[%s0 + $0x20] sm:$0xff]
  %v37 = vld [vmem:[%s0 + $0x28] sm:$0xff]
  %v38 = vld [vmem:[%s0 + $0x30] sm:$0xff]
  %v39 = vld [vmem:[%s0 + $0x38] sm:$0xff]
  %v40 = vld [vmem:[%s0 + $0x40] sm:$0xff]
  %v41 = vld [vmem:[%s0 + $0x48] sm:$0xff]
  %v42 = vld [vmem:[%s0 + $0x50] sm:$0xff]
  %v43 = vld [vmem:[%s0 + $0x58] sm:$0xff]
  %v44 = vld [vmem:[%s0 + $0x60] sm:$0xff]
  %v45 = vld [vmem:[%s0 + $0x68] sm:$0xff]
  %v46 = vld [vmem:[%s0 + $0x70] sm:$0xff]
  %v47 = vld [vmem:[%s0 + $0x78] sm:$0xff]
  %v48 = vld [vmem:[%s2] sm:$0xff]
  %v49 = vld [vmem:[%s2 + $0x8] sm:$0xff]
  %v50 = vld [vmem:[%s2 + $0x10] sm:$0xff]
  %v51 = vld [vmem:[%s2 + $0x18] sm:$0xff]
  %v52 = vld [vmem:[%s2 + $0x20] sm:$0xff]
  %v53 = vld [vmem:[%s2 + $0x28] sm:$0xff]
  %v54 = vld [vmem:[%s2 + $0x30] sm:$0xff]
  %v55 = vld [vmem:[%s2 + $0x38] sm:$0xff]
  %v56 = vld [vmem:[%s2 + $0x40] sm:$0xff]
  %v57 = vld [vmem:[%s2 + $0x48] sm:$0xff]
  %v58 = vld [vmem:[%s2 + $0x50] sm:$0xff]
  %v59 = vld [vmem:[%s2 + $0x58] sm:$0xff]
  %v60 = vld [vmem:[%s2 + $0x60] sm:$0xff]
  %v61 = vld [vmem:[%s2 + $0x68] sm:$0xff]
  %v62 = vld [vmem:[%s2 + $0x70] sm:$0xff]
  %v63 = vld [vmem:[%s2 + $0x78] sm:$0xff]
  %v64 = vld [vmem:[%s2 + $0x80] sm:$0xff]
  %v65 = vld [vmem:[%s2 + $0x88] sm:$0xff]
  %v66 = vld [vmem:[%s2 + $0x90] sm:$0xff]
  %v67 = vld [vmem:[%s2 + $0x98] sm:$0xff]
  %v68 = vld [vmem:[%s2 + $0xa0] sm:$0xff]
  %v69 = vld [vmem:[%s2 + $0xa8] sm:$0xff]
  %v70 = vld [vmem:[%s2 + $0xb0] sm:$0xff]
  %v71 = vld [vmem:[%s2 + $0xb8] sm:$0xff]
  %v72 = vld [vmem:[%s2 + $0xc0] sm:$0xff]
  %v73 = vld [vmem:[%s2 + $0xc8] sm:$0xff]
  %v74 = vld [vmem:[%s2 + $0xd0] sm:$0xff]
  %v75 = vld [vmem:[%s2 + $0xd8] sm:$0xff]
  %v76 = vld [vmem:[%s2 + $0xe0] sm:$0xff]
  %v77 = vld [vmem:[%s2 + $0xe8] sm:$0xff]
  %v78 = vld [vmem:[%s2 + $0xf0] sm:$0xff]
  %v79 = vld [vmem:[%s2 + $0xf8] sm:$0xff]
  %v80 = vld [vmem:[%s2 + $0x100] sm:$0xff]
  %v81 = vld [vmem:[%s2 + $0x108] sm:$0xff]
  %v82 = vld [vmem:[%s2 + $0x110] sm:$0xff]
  %v83 = vld [vmem:[%s2 + $0x118] sm:$0xff]
  %v84 = vld [vmem:[%s2 + $0x120] sm:$0xff]
  %v85 = vld [vmem:[%s2 + $0x128] sm:$0xff]
  %v86 = vld [vmem:[%s2 + $0x130] sm:$0xff]
  %v87 = vld [vmem:[%s2 + $0x138] sm:$0xff]
  %v88 = vld [vmem:[%s2 + $0x140] sm:$0xff]
  %v89 = vld [vmem:[%s2 + $0x148] sm:$0xff]
  %v90 = vld [vmem:[%s2 + $0x150] sm:$0xff]
  %v91 = vld [vmem:[%s2 + $0x158] sm:$0xff]
  %v92 = vld [vmem:[%s2 + $0x160] sm:$0xff]
  %v93 = vld [vmem:[%s2 + $0x168] sm:$0xff]
  %v94 = vld [vmem:[%s2 + $0x170] sm:$0xff]
  %v95 = vld [vmem:[%s2 + $0x178] sm:$0xff]
  %v96 = vld [vmem:[%s2 + $0x180] sm:$0xff]
  %v97 = vld [vmem:[%s2 + $0x188] sm:$0xff]
  %v98 = vld [vmem:[%s2 + $0x190] sm:$0xff]
  %v99 = vld [vmem:[%s2 + $0x198] sm:$0xff]
  %v100 = vld [vmem:[%s2 + $0x1a0] sm:$0xff]
  %v101 = vld [vmem:[%s2 + $0x1a8] sm:$0xff]
  %v102 = vld [vmem:[%s2 + $0x1b0] sm:$0xff]
  %v103 = vld [vmem:[%s2 + $0x1b8] sm:$0xff]
  %v104 = vld [vmem:[%s2 + $0x1c0] sm:$0xff]
  %v105 = vld [vmem:[%s2 + $0x1c8] sm:$0xff]
  %v106 = vld [vmem:[%s2 + $0x1d0] sm:$0xff]
  %v107 = vld [vmem:[%s2 + $0x1d8] sm:$0xff]
  %v108 = vld [vmem:[%s2 + $0x1e0] sm:$0xff]
  %v109 = vld [vmem:[%s2 + $0x1e8] sm:$0xff]
  %v110 = vld [vmem:[%s2 + $0x1f0] sm:$0xff]
  %v111 = vld [vmem:[%s2 + $0x1f8] sm:$0xff]
  %v112 = vld [vmem:[%s2 + $0x200] sm:$0xff]
  %v113 = vld [vmem:[%s2 + $0x208] sm:$0xff]
  %v114 = vld [vmem:[%s2 + $0x210] sm:$0xff]
  %v115 = vld [vmem:[%s2 + $0x218] sm:$0xff]
  %v116 = vld [vmem:[%s2 + $0x220] sm:$0xff]
  %v117 = vld [vmem:[%s2 + $0x228] sm:$0xff]
  %v118 = vld [vmem:[%s2 + $0x230] sm:$0xff]
  %v119 = vld [vmem:[%s2 + $0x238] sm:$0xff]
  %v120 = vld [vmem:[%s2 + $0x240] sm:$0xff]
  %v121 = vld [vmem:[%s2 + $0x248] sm:$0xff]
  %v122 = vld [vmem:[%s2 + $0x250] sm:$0xff]
  %v123 = vld [vmem:[%s2 + $0x258] sm:$0xff]
  %v124 = vld [vmem:[%s2 + $0x260] sm:$0xff]
  %v125 = vld [vmem:[%s2 + $0x268] sm:$0xff]
  %v126 = vld [vmem:[%s2 + $0x270] sm:$0xff]
  %v127 = vld [vmem:[%s2 + $0x278] sm:$0xff]
  %v128 = vld [vmem:[%s2 + $0x280] sm:$0xff]
  %v129 = vld [vmem:[%s2 + $0x288] sm:$0xff]
  %v130 = vld [vmem:[%s2 + $0x290] sm:$0xff]
  %v131 = vld [vmem:[%s2 + $0x298] sm:$0xff]
  %v132 = vld [vmem:[%s2 + $0x2a0] sm:$0xff]
  %v133 = vld [vmem:[%s2 + $0x2a8] sm:$0xff]
  %v134 = vld [vmem:[%s2 + $0x2b0] sm:$0xff]
  %v135 = vld [vmem:[%s2 + $0x2b8] sm:$0xff]
  %v136 = vld [vmem:[%s2 + $0x2c0] sm:$0xff]
  %v137 = vld [vmem:[%s2 + $0x2c8] sm:$0xff]
  %v138 = vld [vmem:[%s2 + $0x2d0] sm:$0xff]
  %v139 = vld [vmem:[%s2 + $0x2d8] sm:$0xff]
  %v140 = vld [vmem:[%s2 + $0x2e0] sm:$0xff]
  %v141 = vld [vmem:[%s2 + $0x2e8] sm:$0xff]
  %v142 = vld [vmem:[%s2 + $0x2f0] sm:$0xff]
  %v143 = vld [vmem:[%s2 + $0x2f8] sm:$0xff]
  %v144 = vld [vmem:[%s2 + $0x300] sm:$0xff]
  %v145 = vld [vmem:[%s2 + $0x308] sm:$0xff]
  %v146 = vld [vmem:[%s2 + $0x310] sm:$0xff]
  %v147 = vld [vmem:[%s2 + $0x318] sm:$0xff]
  %v148 = vld [vmem:[%s2 + $0x320] sm:$0xff]
  %v149 = vld [vmem:[%s2 + $0x328] sm:$0xff]
  %v150 = vld [vmem:[%s2 + $0x330] sm:$0xff]
  %v151 = vld [vmem:[%s2 + $0x338] sm:$0xff]
  %v152 = vld [vmem:[%s2 + $0x340] sm:$0xff]
  %v153 = vld [vmem:[%s2 + $0x348] sm:$0xff]
  %v154 = vld [vmem:[%s2 + $0x350] sm:$0xff]
  %v155 = vld [vmem:[%s2 + $0x358] sm:$0xff]
  %v156 = vld [vmem:[%s2 + $0x360] sm:$0xff]
  %v157 = vld [vmem:[%s2 + $0x368] sm:$0xff]
  %v158 = vld [vmem:[%s2 + $0x370] sm:$0xff]
  %v159 = vld [vmem:[%s2 + $0x378] sm:$0xff]
  %v160 = vld [vmem:[%s2 + $0x380] sm:$0xff]
  %v161 = vld [vmem:[%s2 + $0x388] sm:$0xff]
  %v162 = vld [vmem:[%s2 + $0x390] sm:$0xff]
  %v163 = vld [vmem:[%s2 + $0x398] sm:$0xff]
  %v164 = vld [vmem:[%s2 + $0x3a0] sm:$0xff]
  %v165 = vld [vmem:[%s2 + $0x3a8] sm:$0xff]
  %v166 = vld [vmem:[%s2 + $0x3b0] sm:$0xff]
  %v167 = vld [vmem:[%s2 + $0x3b8] sm:$0xff]
  %v168 = vld [vmem:[%s2 + $0x3c0] sm:$0xff]
  %v169 = vld [vmem:[%s2 + $0x3c8] sm:$0xff]
  %v170 = vld [vmem:[%s2 + $0x3d0] sm:$0xff]
  %v171 = vld [vmem:[%s2 + $0x3d8] sm:$0xff]
  %v172 = vld [vmem:[%s2 + $0x3e0] sm:$0xff]
  %v173 = vld [vmem:[%s2 + $0x3e8] sm:$0xff]
  %v174 = vld [vmem:[%s2 + $0x3f0] sm:$0x3f]
  %v175 = vld [vmem:[%s3] sm:$0x1]
  %v177 = vlaneseq
  %v178 = vshrl.u32 %v177, 7
  %v179 = vsub.s32 0, %v178
  %v180 = vrot.slane %v175, %v179
  %vm182 = vcmask 965632
  %v184 = vsel %vm182, %v39, 0
  %v187 = vsel %vm182, %v47, 0
  %vm189 = vcmask 1045504
  %v191 = vsel %vm189, %v174, 0
  %193 = vmatprep.subr.mxu0 0.0
  %194 = vmatpush1.msra.mxu0 %v48
  %195 = vmatprep.subr.mxu0 0.0
  %196 = vmatpush1.msra.mxu0 %v49
  %197 = vmatprep.subr.mxu0 0.0
  %198 = vmatpush1.msra.mxu0 %v50
  %199 = vmatprep.subr.mxu0 0.0
  %200 = vmatpush1.msra.mxu0 %v51
  %201 = vmatprep.subr.mxu0 0.0
  %202 = vmatpush1.msra.mxu0 %v52
  %203 = vmatprep.subr.mxu0 0.0
  %204 = vmatpush1.msra.mxu0 %v53
  %205 = vmatprep.subr.mxu0 0.0
  %206 = vmatpush1.msra.mxu0 %v54
  %207 = vmatprep.subr.mxu0 0.0
  %208 = vmatpush1.msra.mxu0 %v55
  %209 = vmatprep.subr.mxu0 0.0
  %210 = vmatpush1.msra.mxu0 %v56
  %211 = vmatprep.subr.mxu0 0.0
  %212 = vmatpush1.msra.mxu0 %v57
  %213 = vmatprep.subr.mxu0 0.0
  %214 = vmatpush1.msra.mxu0 %v58
  %215 = vmatprep.subr.mxu0 0.0
  %216 = vmatpush1.msra.mxu0 %v59
  %217 = vmatprep.subr.mxu0 0.0
  %218 = vmatpush1.msra.mxu0 %v60
  %219 = vmatprep.subr.mxu0 0.0
  %220 = vmatpush1.msra.mxu0 %v61
  %221 = vmatprep.subr.mxu0 0.0
  %222 = vmatpush1.msra.mxu0 %v62
  %223 = vmatprep.subr.mxu0 0.0
  %224 = vmatpush1.msra.mxu0 %v63
  %225 = vmatprep.subr.mxu0 0.0
  %226 = vmatpush1.msra.mxu0 %v64
  %227 = vmatprep.subr.mxu0 0.0
  %228 = vmatpush1.msra.mxu0 %v65
  %229 = vmatprep.subr.mxu0 0.0
  %230 = vmatpush1.msra.mxu0 %v66
  %231 = vmatprep.subr.mxu0 0.0
  %232 = vmatpush1.msra.mxu0 %v67
  %233 = vmatprep.subr.mxu0 0.0
  %234 = vmatpush1.msra.mxu0 %v68
  %235 = vmatprep.subr.mxu0 0.0
  %236 = vmatpush1.msra.mxu0 %v69
  %237 = vmatprep.subr.mxu0 0.0
  %238 = vmatpush1.msra.mxu0 %v70
  %239 = vmatprep.subr.mxu0 0.0
  %240 = vmatpush1.msra.mxu0 %v71
  %241 = vmatprep.subr.mxu0 0.0
  %242 = vmatpush1.msra.mxu0 %v72
  %243 = vmatprep.subr.mxu0 0.0
  %244 = vmatpush1.msra.mxu0 %v73
  %245 = vmatprep.subr.mxu0 0.0
  %246 = vmatpush1.msra.mxu0 %v74
  %247 = vmatprep.subr.mxu0 0.0
  %248 = vmatpush1.msra.mxu0 %v75
  %249 = vmatprep.subr.mxu0 0.0
  %250 = vmatpush1.msra.mxu0 %v76
  %251 = vmatprep.subr.mxu0 0.0
  %252 = vmatpush1.msra.mxu0 %v77
  %253 = vmatprep.subr.mxu0 0.0
  %254 = vmatpush1.msra.mxu0 %v78
  %255 = vmatprep.subr.mxu0 0.0
  %256 = vmatpush1.msra.mxu0 %v79
  %257 = vmatprep.mubr.f32.mxu0 %v33
  %258 = vmatmul.mubr.f32.gmra.mrb[0].mxu0 %v32
  %v259 = vpop.f32.mrb[0].mxu0
  %v260 = vadd.f32 %v180, %v259
  %v261 = vpop.f32.mrb[0].mxu0
  %262 = vmatprep.mubr.f32.mxu0 %v41
  %263 = vmatmul.mubr.f32.gmra.mrb[0].mxu0 %v40
  %v264 = vpop.f32.mrb[0].mxu0
  %v265 = vadd.f32 %v180, %v264
  %v266 = vpop.f32.mrb[0].mxu0
  %267 = vdwg.mxu0
  %268 = vmatprep.subr.mxu0 0.0
  %269 = vmatpush1.msra.mxu0 %v80
  %270 = vmatprep.subr.mxu0 0.0
  %271 = vmatpush1.msra.mxu0 %v81
  %272 = vmatprep.subr.mxu0 0.0
  %273 = vmatpush1.msra.mxu0 %v82
  %274 = vmatprep.subr.mxu0 0.0
  %275 = vmatpush1.msra.mxu0 %v83
  %276 = vmatprep.subr.mxu0 0.0
  %277 = vmatpush1.msra.mxu0 %v84
  %278 = vmatprep.subr.mxu0 0.0
  %279 = vmatpush1.msra.mxu0 %v85
  %280 = vmatprep.subr.mxu0 0.0
  %281 = vmatpush1.msra.mxu0 %v86
  %282 = vmatprep.subr.mxu0 0.0
  %283 = vmatpush1.msra.mxu0 %v87
  %284 = vmatprep.subr.mxu0 0.0
  %285 = vmatpush1.msra.mxu0 %v88
  %286 = vmatprep.subr.mxu0 0.0
  %287 = vmatpush1.msra.mxu0 %v89
  %288 = vmatprep.subr.mxu0 0.0
  %289 = vmatpush1.msra.mxu0 %v90
  %290 = vmatprep.subr.mxu0 0.0
  %291 = vmatpush1.msra.mxu0 %v91
  %292 = vmatprep.subr.mxu0 0.0
  %293 = vmatpush1.msra.mxu0 %v92
  %294 = vmatprep.subr.mxu0 0.0
  %295 = vmatpush1.msra.mxu0 %v93
  %296 = vmatprep.subr.mxu0 0.0
  %297 = vmatpush1.msra.mxu0 %v94
  %298 = vmatprep.subr.mxu0 0.0
  %299 = vmatpush1.msra.mxu0 %v95
  %300 = vmatprep.subr.mxu0 0.0
  %301 = vmatpush1.msra.mxu0 %v96
  %302 = vmatprep.subr.mxu0 0.0
  %303 = vmatpush1.msra.mxu0 %v97
  %304 = vmatprep.subr.mxu0 0.0
  %305 = vmatpush1.msra.mxu0 %v98
  %306 = vmatprep.subr.mxu0 0.0
  %307 = vmatpush1.msra.mxu0 %v99
  %308 = vmatprep.subr.mxu0 0.0
  %309 = vmatpush1.msra.mxu0 %v100
  %310 = vmatprep.subr.mxu0 0.0
  %311 = vmatpush1.msra.mxu0 %v101
  %312 = vmatprep.subr.mxu0 0.0
  %313 = vmatpush1.msra.mxu0 %v102
  %314 = vmatprep.subr.mxu0 0.0
  %315 = vmatpush1.msra.mxu0 %v103
  %316 = vmatprep.subr.mxu0 0.0
  %317 = vmatpush1.msra.mxu0 %v104
  %318 = vmatprep.subr.mxu0 0.0
  %319 = vmatpush1.msra.mxu0 %v105
  %320 = vmatprep.subr.mxu0 0.0
  %321 = vmatpush1.msra.mxu0 %v106
  %322 = vmatprep.subr.mxu0 0.0
  %323 = vmatpush1.msra.mxu0 %v107
  %324 = vmatprep.subr.mxu0 0.0
  %325 = vmatpush1.msra.mxu0 %v108
  %326 = vmatprep.subr.mxu0 0.0
  %327 = vmatpush1.msra.mxu0 %v109
  %328 = vmatprep.subr.mxu0 0.0
  %329 = vmatpush1.msra.mxu0 %v110
  %330 = vmatprep.subr.mxu0 0.0
  %331 = vmatpush1.msra.mxu0 %v111
  %332 = vmatprep.mubr.f32.mxu0 %v35
  %333 = vmatmul.mubr.f32.gmra.mrb[0].mxu0 %v34
  %v334 = vpop.f32.mrb[0].mxu0
  %v335 = vadd.f32 %v260, %v334
  %v336 = vpop.f32.mrb[0].mxu0
  %337 = vmatprep.mubr.f32.mxu0 %v43
  %338 = vmatmul.mubr.f32.gmra.mrb[0].mxu0 %v42
  %v339 = vpop.f32.mrb[0].mxu0
  %v340 = vadd.f32 %v265, %v339
  %v341 = vpop.f32.mrb[0].mxu0
  %342 = vdwg.mxu0
  %343 = vmatprep.subr.mxu0 0.0
  %344 = vmatpush1.msra.mxu0 %v112
  %345 = vmatprep.subr.mxu0 0.0
  %346 = vmatpush1.msra.mxu0 %v113
  %347 = vmatprep.subr.mxu0 0.0
  %348 = vmatpush1.msra.mxu0 %v114
  %349 = vmatprep.subr.mxu0 0.0
  %350 = vmatpush1.msra.mxu0 %v115
  %351 = vmatprep.subr.mxu0 0.0
  %352 = vmatpush1.msra.mxu0 %v116
  %353 = vmatprep.subr.mxu0 0.0
  %354 = vmatpush1.msra.mxu0 %v117
  %355 = vmatprep.subr.mxu0 0.0
  %356 = vmatpush1.msra.mxu0 %v118
  %357 = vmatprep.subr.mxu0 0.0
  %358 = vmatpush1.msra.mxu0 %v119
  %359 = vmatprep.subr.mxu0 0.0
  %360 = vmatpush1.msra.mxu0 %v120
  %361 = vmatprep.subr.mxu0 0.0
  %362 = vmatpush1.msra.mxu0 %v121
  %363 = vmatprep.subr.mxu0 0.0
  %364 = vmatpush1.msra.mxu0 %v122
  %365 = vmatprep.subr.mxu0 0.0
  %366 = vmatpush1.msra.mxu0 %v123
  %367 = vmatprep.subr.mxu0 0.0
  %368 = vmatpush1.msra.mxu0 %v124
  %369 = vmatprep.subr.mxu0 0.0
  %370 = vmatpush1.msra.mxu0 %v125
  %371 = vmatprep.subr.mxu0 0.0
  %372 = vmatpush1.msra.mxu0 %v126
  %373 = vmatprep.subr.mxu0 0.0
  %374 = vmatpush1.msra.mxu0 %v127
  %375 = vmatprep.subr.mxu0 0.0
  %376 = vmatpush1.msra.mxu0 %v128
  %377 = vmatprep.subr.mxu0 0.0
  %378 = vmatpush1.msra.mxu0 %v129
  %379 = vmatprep.subr.mxu0 0.0
  %380 = vmatpush1.msra.mxu0 %v130
  %381 = vmatprep.subr.mxu0 0.0
  %382 = vmatpush1.msra.mxu0 %v131
  %383 = vmatprep.subr.mxu0 0.0
  %384 = vmatpush1.msra.mxu0 %v132
  %385 = vmatprep.subr.mxu0 0.0
  %386 = vmatpush1.msra.mxu0 %v133
  %387 = vmatprep.subr.mxu0 0.0
  %388 = vmatpush1.msra.mxu0 %v134
  %389 = vmatprep.subr.mxu0 0.0
  %390 = vmatpush1.msra.mxu0 %v135
  %391 = vmatprep.subr.mxu0 0.0
  %392 = vmatpush1.msra.mxu0 %v136
  %393 = vmatprep.subr.mxu0 0.0
  %394 = vmatpush1.msra.mxu0 %v137
  %395 = vmatprep.subr.mxu0 0.0
  %396 = vmatpush1.msra.mxu0 %v138
  %397 = vmatprep.subr.mxu0 0.0
  %398 = vmatpush1.msra.mxu0 %v139
  %399 = vmatprep.subr.mxu0 0.0
  %400 = vmatpush1.msra.mxu0 %v140
  %401 = vmatprep.subr.mxu0 0.0
  %402 = vmatpush1.msra.mxu0 %v141
  %403 = vmatprep.subr.mxu0 0.0
  %404 = vmatpush1.msra.mxu0 %v142
  %405 = vmatprep.subr.mxu0 0.0
  %406 = vmatpush1.msra.mxu0 %v143
  %407 = vmatprep.mubr.f32.mxu0 %v37
  %408 = vmatmul.mubr.f32.gmra.mrb[0].mxu0 %v36
  %v409 = vpop.f32.mrb[0].mxu0
  %v410 = vadd.f32 %v335, %v409
  %v411 = vpop.f32.mrb[0].mxu0
  %412 = vmatprep.mubr.f32.mxu0 %v45
  %413 = vmatmul.mubr.f32.gmra.mrb[0].mxu0 %v44
  %v414 = vpop.f32.mrb[0].mxu0
  %v415 = vadd.f32 %v340, %v414
  %v416 = vpop.f32.mrb[0].mxu0
  %417 = vdwg.mxu0
  %418 = vmatprep.subr.mxu0 0.0
  %419 = vmatpush1.msra.mxu0 %v144
  %420 = vmatprep.subr.mxu0 0.0
  %421 = vmatpush1.msra.mxu0 %v145
  %422 = vmatprep.subr.mxu0 0.0
  %423 = vmatpush1.msra.mxu0 %v146
  %424 = vmatprep.subr.mxu0 0.0
  %425 = vmatpush1.msra.mxu0 %v147
  %426 = vmatprep.subr.mxu0 0.0
  %427 = vmatpush1.msra.mxu0 %v148
  %428 = vmatprep.subr.mxu0 0.0
  %429 = vmatpush1.msra.mxu0 %v149
  %430 = vmatprep.subr.mxu0 0.0
  %431 = vmatpush1.msra.mxu0 %v150
  %432 = vmatprep.subr.mxu0 0.0
  %433 = vmatpush1.msra.mxu0 %v151
  %434 = vmatprep.subr.mxu0 0.0
  %435 = vmatpush1.msra.mxu0 %v152
  %436 = vmatprep.subr.mxu0 0.0
  %437 = vmatpush1.msra.mxu0 %v153
  %438 = vmatprep.subr.mxu0 0.0
  %439 = vmatpush1.msra.mxu0 %v154
  %440 = vmatprep.subr.mxu0 0.0
  %441 = vmatpush1.msra.mxu0 %v155
  %442 = vmatprep.subr.mxu0 0.0
  %443 = vmatpush1.msra.mxu0 %v156
  %444 = vmatprep.subr.mxu0 0.0
  %445 = vmatpush1.msra.mxu0 %v157
  %446 = vmatprep.subr.mxu0 0.0
  %447 = vmatpush1.msra.mxu0 %v158
  %448 = vmatprep.subr.mxu0 0.0
  %449 = vmatpush1.msra.mxu0 %v159
  %450 = vmatprep.subr.mxu0 0.0
  %451 = vmatpush1.msra.mxu0 %v160
  %452 = vmatprep.subr.mxu0 0.0
  %453 = vmatpush1.msra.mxu0 %v161
  %454 = vmatprep.subr.mxu0 0.0
  %455 = vmatpush1.msra.mxu0 %v162
  %456 = vmatprep.subr.mxu0 0.0
  %457 = vmatpush1.msra.mxu0 %v163
  %458 = vmatprep.subr.mxu0 0.0
  %459 = vmatpush1.msra.mxu0 %v164
  %460 = vmatprep.subr.mxu0 0.0
  %461 = vmatpush1.msra.mxu0 %v165
  %462 = vmatprep.subr.mxu0 0.0
  %463 = vmatpush1.msra.mxu0 %v166
  %464 = vmatprep.subr.mxu0 0.0
  %465 = vmatpush1.msra.mxu0 %v167
  %466 = vmatprep.subr.mxu0 0.0
  %467 = vmatpush1.msra.mxu0 %v168
  %468 = vmatprep.subr.mxu0 0.0
  %469 = vmatpush1.msra.mxu0 %v169
  %470 = vmatprep.subr.mxu0 0.0
  %471 = vmatpush1.msra.mxu0 %v170
  %472 = vmatprep.subr.mxu0 0.0
  %473 = vmatpush1.msra.mxu0 %v171
  %474 = vmatprep.subr.mxu0 0.0
  %475 = vmatpush1.msra.mxu0 %v172
  %476 = vmatprep.subr.mxu0 0.0
  %477 = vmatpush1.msra.mxu0 %v173
  %478 = vmatprep.subr.mxu0 0.0
  %479 = vmatpush1.msra.mxu0 %v191
  %480 = vmatprep.subr.mxu0 0.0
  %481 = vmatpush1.msra.mxu0 0.0
  %482 = vmatprep.mubr.f32.mxu0 %v184
  %483 = vmatmul.mubr.f32.gmra.mrb[0].mxu0 %v38
  %v484 = vpop.f32.mrb[0].mxu0
  %v485 = vadd.f32 %v410, %v484
  %v486 = vpop.f32.mrb[0].mxu0
  %487 = vmatprep.mubr.f32.mxu0 %v187
  %488 = vmatmul.mubr.f32.gmra.mrb[0].mxu0 %v46
  %v489 = vpop.f32.mrb[0].mxu0
  %v490 = vadd.f32 %v415, %v489
  %v491 = vpop.f32.mrb[0].mxu0
  %492 = vdwg.mxu0
  %vm493 = vcmp.gt.f32.partialorder %v485, 0.0
  %vm494 = vcmp.gt.f32.partialorder %v490, 0.0
  %v495 = vmul.f32 %v485, 0.01
  %v496 = vmul.f32 %v490, 0.01
  %v497 = vsel %vm493, %v485, %v495
  %v498 = vsel %vm494, %v490, %v496
  %v499 = vld [vmem:[%s4] sm:$0xff]
  %v500 = vld [vmem:[%s4 + $0x8] sm:$0xff]
  %v501 = vld [vmem:[%s4 + $0x10] sm:$0xff]
  %v502 = vld [vmem:[%s4 + $0x18] sm:$0xff]
  %v503 = vld [vmem:[%s5] sm:$0x1]
  %v505 = vlaneseq
  %v506 = vshrl.u32 %v505, 7
  %v507 = vsub.s32 0, %v506
  %v508 = vrot.slane %v503, %v507
  %vm510 = vcmask 261120
  %v512 = vsel %vm510, %v497, 0
  %v515 = vsel %vm510, %v498, 0
  %517 = vmatprep.subr.mxu0 0.0
  %518 = vmatpush1.msra.mxu0 %v499
  %519 = vmatprep.subr.mxu0 0.0
  %520 = vmatpush1.msra.mxu0 %v500
  %521 = vmatprep.subr.mxu0 0.0
  %522 = vmatpush1.msra.mxu0 %v501
  %523 = vmatprep.subr.mxu0 0.0
  %524 = vmatpush1.msra.mxu0 %v502
  %525 = vmatprep.subr.mxu0 0.0
  %526 = vmatpush1.msra.mxu0 0.0
  %527 = vmatprep.subr.mxu0 0.0
  %528 = vmatpush1.msra.mxu0 0.0
  %529 = vmatprep.subr.mxu0 0.0
  %530 = vmatpush1.msra.mxu0 0.0
  %531 = vmatprep.subr.mxu0 0.0
  %532 = vmatpush1.msra.mxu0 0.0
  %533 = vmatprep.subr.mxu0 0.0
  %534 = vmatpush1.msra.mxu0 0.0
  %535 = vmatprep.subr.mxu0 0.0
  %536 = vmatpush1.msra.mxu0 0.0
  %537 = vmatprep.subr.mxu0 0.0
  %538 = vmatpush1.msra.mxu0 0.0
  %539 = vmatprep.subr.mxu0 0.0
  %540 = vmatpush1.msra.mxu0 0.0
  %541 = vmatprep.subr.mxu0 0.0
  %542 = vmatpush1.msra.mxu0 0.0
  %543 = vmatprep.subr.mxu0 0.0
  %544 = vmatpush1.msra.mxu0 0.0
  %545 = vmatprep.subr.mxu0 0.0
  %546 = vmatpush1.msra.mxu0 0.0
  %547 = vmatprep.subr.mxu0 0.0
  %548 = vmatpush1.msra.mxu0 0.0
  %549 = vmatprep.subr.mxu0 0.0
  %550 = vmatpush1.msra.mxu0 0.0
  %551 = vmatprep.subr.mxu0 0.0
  %552 = vmatpush1.msra.mxu0 0.0
  %553 = vmatprep.subr.mxu0 0.0
  %554 = vmatpush1.msra.mxu0 0.0
  %555 = vmatprep.subr.mxu0 0.0
  %556 = vmatpush1.msra.mxu0 0.0
  %557 = vmatprep.subr.mxu0 0.0
  %558 = vmatpush1.msra.mxu0 0.0
  %559 = vmatprep.subr.mxu0 0.0
  %560 = vmatpush1.msra.mxu0 0.0
  %561 = vmatprep.subr.mxu0 0.0
  %562 = vmatpush1.msra.mxu0 0.0
  %563 = vmatprep.subr.mxu0 0.0
  %564 = vmatpush1.msra.mxu0 0.0
  %565 = vmatprep.subr.mxu0 0.0
  %566 = vmatpush1.msra.mxu0 0.0
  %567 = vmatprep.subr.mxu0 0.0
  %568 = vmatpush1.msra.mxu0 0.0
  %569 = vmatprep.subr.mxu0 0.0
  %570 = vmatpush1.msra.mxu0 0.0
  %571 = vmatprep.subr.mxu0 0.0
  %572 = vmatpush1.msra.mxu0 0.0
  %573 = vmatprep.subr.mxu0 0.0
  %574 = vmatpush1.msra.mxu0 0.0
  %575 = vmatprep.subr.mxu0 0.0
  %576 = vmatpush1.msra.mxu0 0.0
  %577 = vmatprep.subr.mxu0 0.0
  %578 = vmatpush1.msra.mxu0 0.0
  %579 = vmatprep.subr.mxu0 0.0
  %580 = vmatpush1.msra.mxu0 0.0
  %581 = vmatprep.mubr.f32.mxu0 0.0
  %582 = vmatmul.mubr.f32.gmra.mrb[0].mxu0 %v512
  %v583 = vpop.f32.mrb[0].mxu0
  %v584 = vadd.f32 %v508, %v583
  %v585 = vpop.f32.mrb[0].mxu0
  %586 = vmatprep.mubr.f32.mxu0 0.0
  %587 = vmatmul.mubr.f32.gmra.mrb[0].mxu0 %v515
  %v588 = vpop.f32.mrb[0].mxu0
  %v589 = vadd.f32 %v508, %v588
  %v590 = vpop.f32.mrb[0].mxu0
  %591 = vdwg.mxu0
  %vm592 = vcmp.gt.f32.partialorder %v584, 0.0
  %vm593 = vcmp.gt.f32.partialorder %v589, 0.0
  %v594 = vmul.f32 %v584, 0.01
  %v595 = vmul.f32 %v589, 0.01
  %v596 = vsel %vm592, %v584, %v594
  %v597 = vsel %vm593, %v589, %v595
  %v598 = vld [vmem:[%s6] sm:$0xff]
  %v599 = vld [vmem:[%s6 + $0x8] sm:$0xff]
  %v600 = vld [vmem:[%s6 + $0x10] sm:$0xff]
  %v601 = vld [vmem:[%s6 + $0x18] sm:$0xff]
  %v602 = vld [vmem:[%s8] sm:$0x1]
  %v604 = vlaneseq
  %v605 = vshrl.u32 %v604, 7
  %v606 = vsub.s32 0, %v605
  %v607 = vrot.slane %v602, %v606
  %v610 = vsel %vm510, %v596, 0
  %v613 = vsel %vm510, %v597, 0
  %615 = vmatprep.subr.mxu0 0.0
  %616 = vmatpush1.msra.mxu0 %v598
  %617 = vmatprep.subr.mxu0 0.0
  %618 = vmatpush1.msra.mxu0 %v599
  %619 = vmatprep.subr.mxu0 0.0
  %620 = vmatpush1.msra.mxu0 %v600
  %621 = vmatprep.subr.mxu0 0.0
  %622 = vmatpush1.msra.mxu0 %v601
  %623 = vmatprep.subr.mxu0 0.0
  %624 = vmatpush1.msra.mxu0 0.0
  %625 = vmatprep.subr.mxu0 0.0
  %626 = vmatpush1.msra.mxu0 0.0
  %627 = vmatprep.subr.mxu0 0.0
  %628 = vmatpush1.msra.mxu0 0.0
  %629 = vmatprep.subr.mxu0 0.0
  %630 = vmatpush1.msra.mxu0 0.0
  %631 = vmatprep.subr.mxu0 0.0
  %632 = vmatpush1.msra.mxu0 0.0
  %633 = vmatprep.subr.mxu0 0.0
  %634 = vmatpush1.msra.mxu0 0.0
  %635 = vmatprep.subr.mxu0 0.0
  %636 = vmatpush1.msra.mxu0 0.0
  %637 = vmatprep.subr.mxu0 0.0
  %638 = vmatpush1.msra.mxu0 0.0
  %639 = vmatprep.subr.mxu0 0.0
  %640 = vmatpush1.msra.mxu0 0.0
  %641 = vmatprep.subr.mxu0 0.0
  %642 = vmatpush1.msra.mxu0 0.0
  %643 = vmatprep.subr.mxu0 0.0
  %644 = vmatpush1.msra.mxu0 0.0
  %645 = vmatprep.subr.mxu0 0.0
  %646 = vmatpush1.msra.mxu0 0.0
  %647 = vmatprep.subr.mxu0 0.0
  %648 = vmatpush1.msra.mxu0 0.0
  %649 = vmatprep.subr.mxu0 0.0
  %650 = vmatpush1.msra.mxu0 0.0
  %651 = vmatprep.subr.mxu0 0.0
  %652 = vmatpush1.msra.mxu0 0.0
  %653 = vmatprep.subr.mxu0 0.0
  %654 = vmatpush1.msra.mxu0 0.0
  %655 = vmatprep.subr.mxu0 0.0
  %656 = vmatpush1.msra.mxu0 0.0
  %657 = vmatprep.subr.mxu0 0.0
  %658 = vmatpush1.msra.mxu0 0.0
  %659 = vmatprep.subr.mxu0 0.0
  %660 = vmatpush1.msra.mxu0 0.0
  %661 = vmatprep.subr.mxu0 0.0
  %662 = vmatpush1.msra.mxu0 0.0
  %663 = vmatprep.subr.mxu0 0.0
  %664 = vmatpush1.msra.mxu0 0.0
  %665 = vmatprep.subr.mxu0 0.0
  %666 = vmatpush1.msra.mxu0 0.0
  %667 = vmatprep.subr.mxu0 0.0
  %668 = vmatpush1.msra.mxu0 0.0
  %669 = vmatprep.subr.mxu0 0.0
  %670 = vmatpush1.msra.mxu0 0.0
  %671 = vmatprep.subr.mxu0 0.0
  %672 = vmatpush1.msra.mxu0 0.0
  %673 = vmatprep.subr.mxu0 0.0
  %674 = vmatpush1.msra.mxu0 0.0
  %675 = vmatprep.subr.mxu0 0.0
  %676 = vmatpush1.msra.mxu0 0.0
  %677 = vmatprep.subr.mxu0 0.0
  %678 = vmatpush1.msra.mxu0 0.0
  %679 = vmatprep.mubr.f32.mxu0 0.0
  %680 = vmatmul.mubr.f32.gmra.mrb[0].mxu0 %v610
  %v681 = vpop.f32.mrb[0].mxu0
  %v682 = vadd.f32 %v607, %v681
  %v683 = vpop.f32.mrb[0].mxu0
  %684 = vmatprep.mubr.f32.mxu0 0.0
  %685 = vmatmul.mubr.f32.gmra.mrb[0].mxu0 %v613
  %v686 = vpop.f32.mrb[0].mxu0
  %v687 = vadd.f32 %v607, %v686
  %v688 = vpop.f32.mrb[0].mxu0
  %689 = vdwg.mxu0
  %v690 = vld [vmem:[%s1] sm:$0xff]
  %v691 = vld [vmem:[%s1 + $0x8] sm:$0xff]
  %v692 = vld [vmem:[%s7] sm:$0xf]
  %vm693 = vcmp.eq.s32.totalorder %v690, 0
  %vm694 = vcmp.eq.s32.totalorder %v691, 0
  %v695 = vsel %vm693, 1, 0
  %v696 = vsel %vm694, 1, 0
  %v697 = vcvt.s32.f32 %v695
  %v698 = vcvt.s32.f32 %v696
  %700 = vset.pattern.permute.xlu0 0
  %701 = vperm.xlu0 %700, %v697
  %v702 = vpop.permute.xlu0 %701
  %705 = vset.pattern.permute.xlu0 0
  %706 = vperm.xlu0 %705, %v698
  %v707 = vpop.permute.xlu0 %706
  %v709 = vlaneseq
  %v710 = vshrl.u32 %v709, 7
  %v711 = vsub.s32 0, %v710
  %v712 = vrot.slane %v692, %v711
  %v713 = vmul.f32 %v702, %v712
  %v714 = vmul.f32 %v707, %v712
  %v715 = vadd.f32 %v682, %v713
  %v716 = vadd.f32 %v687, %v714
  %vm717 = vcmp.eq.s32.totalorder %v690, 1
  %vm718 = vcmp.eq.s32.totalorder %v691, 1
  %v719 = vsel %vm717, 1, 0
  %v720 = vsel %vm718, 1, 0
  %v721 = vcvt.s32.f32 %v719
  %v722 = vcvt.s32.f32 %v720
  %724 = vset.pattern.permute.xlu0 0
  %725 = vperm.xlu0 %724, %v721
  %v726 = vpop.permute.xlu0 %725
  %729 = vset.pattern.permute.xlu0 0
  %730 = vperm.xlu0 %729, %v722
  %v731 = vpop.permute.xlu0 %730
  %v733 = vlaneseq
  %v734 = vshrl.u32 %v733, 7
  %v735 = vsub.s32 1, %v734
  %v736 = vrot.slane %v692, %v735
  %v737 = vmul.f32 %v726, %v736
  %v738 = vmul.f32 %v731, %v736
  %v739 = vadd.f32 %v715, %v737
  %v740 = vadd.f32 %v716, %v738
  %vm741 = vcmp.eq.s32.totalorder %v690, 2
  %vm742 = vcmp.eq.s32.totalorder %v691, 2
  %v743 = vsel %vm741, 1, 0
  %v744 = vsel %vm742, 1, 0
  %v745 = vcvt.s32.f32 %v743
  %v746 = vcvt.s32.f32 %v744
  %748 = vset.pattern.permute.xlu0 0
  %749 = vperm.xlu0 %748, %v745
  %v750 = vpop.permute.xlu0 %749
  %753 = vset.pattern.permute.xlu0 0
  %754 = vperm.xlu0 %753, %v746
  %v755 = vpop.permute.xlu0 %754
  %v757 = vlaneseq
  %v758 = vshrl.u32 %v757, 7
  %v759 = vsub.s32 2, %v758
  %v760 = vrot.slane %v692, %v759
  %v761 = vmul.f32 %v750, %v760
  %v762 = vmul.f32 %v755, %v760
  %v763 = vadd.f32 %v739, %v761
  %v764 = vadd.f32 %v740, %v762
  %vm765 = vcmp.eq.s32.totalorder %v690, 3
  %vm766 = vcmp.eq.s32.totalorder %v691, 3
  %v767 = vsel %vm765, 1, 0
  %v768 = vsel %vm766, 1, 0
  %v769 = vcvt.s32.f32 %v767
  %v770 = vcvt.s32.f32 %v768
  %772 = vset.pattern.permute.xlu0 0
  %773 = vperm.xlu0 %772, %v769
  %v774 = vpop.permute.xlu0 %773
  %777 = vset.pattern.permute.xlu0 0
  %778 = vperm.xlu0 %777, %v770
  %v779 = vpop.permute.xlu0 %778
  %v781 = vlaneseq
  %v782 = vshrl.u32 %v781, 7
  %v783 = vsub.s32 3, %v782
  %v784 = vrot.slane %v692, %v783
  %v785 = vmul.f32 %v774, %v784
  %v786 = vmul.f32 %v779, %v784
  %v787 = vadd.f32 %v763, %v785
  %v788 = vadd.f32 %v764, %v786
  %vm789 = vcmask 64512
  %790 = vst.msk [vmem:[%s9] sm:$0xff] %vm789, %v787
  %791 = vst.msk [vmem:[%s9 + $0x8] sm:$0xff] %vm789, %v788
  // Predicated region
  $region38: #{tpu_custom_call.1} parent=0 // pred_check
    _
  $region39: #{tpu_custom_call.1} parent=0 // pred_check_branch
    %793 = sbr.rel (0) target = $region41
  $region40: #{tpu_custom_call.1} parent=0 // pred_region
    _
  $region41: #{tpu_custom_call.1} parent=0 // pred_fallthru
    _
  // Predicated region
  $region42: #{tpu_custom_call.1} parent=0 // pred_check
    _
  $region43: #{tpu_custom_call.1} parent=0 // pred_check_branch
    %795 = sbr.rel (0) target = $region45
  $region44: #{tpu_custom_call.1} parent=0 // pred_region
    _
  $region45: #{tpu_custom_call.1} parent=0 // pred_fallthru
    _

</llo_original>
